<compile_context>
chip_gen: v6e
topology: v6e:2x2x1
jax: 0.10.0
libtpu: 0.0.40
codegen_flags: <defaults>
</compile_context>

<pallas_src>
import functools
import math

import jax
import jax.numpy as jnp
from jax.experimental import pallas as pl
from jax.experimental.pallas import tpu as pltpu


# ---------------------------------------------------------------------------
# Kernels
# ---------------------------------------------------------------------------

def _born_epilogue(y_f32, f_out_p, out_dtype):
    """proba = real^2 + imag^2, then L1-normalize along the output-feature axis."""
    real = y_f32[:, :f_out_p]          # lane-tile aligned split (f_out_p % 128 == 0)
    imag = y_f32[:, f_out_p:]
    proba = real * real + imag * imag
    denom = jnp.sum(proba, axis=-1, keepdims=True)
    inv = pl.reciprocal(jnp.maximum(denom, jnp.float32(1e-12)), approx=False)
    return (proba * inv).astype(out_dtype)


def born_kernel(x_ref, w_ref, o_ref, *, f_out_p):
    # One fused MXU matmul against the VMEM-resident packed (F_in, 2*F_out_p) weight.
    y = jnp.dot(x_ref[...], w_ref[...], preferred_element_type=jnp.float32)
    o_ref[...] = _born_epilogue(y, f_out_p, o_ref.dtype)


def born_kernel_ktiled(x_ref, w_ref, o_ref, acc_ref, *, f_out_p):
    # Fallback when the packed weight does not fit VMEM: accumulate over K tiles.
    k = pl.program_id(1)

    @pl.when(k == 0)
    def _():
        acc_ref[...] = jnp.zeros_like(acc_ref)

    acc_ref[...] += jnp.dot(x_ref[...], w_ref[...], preferred_element_type=jnp.float32)

    @pl.when(k == pl.num_programs(1) - 1)
    def _():
        o_ref[...] = _born_epilogue(acc_ref[...], f_out_p, o_ref.dtype)


# ---------------------------------------------------------------------------
# Tiling / budget helpers
# ---------------------------------------------------------------------------

def _round_up(v, m):
    return ((v + m - 1) // m) * m


def _vmem_budgets():
    """(vmem_limit_bytes, tile_budget_bytes), derived from the TPU generation."""
    cap = None
    try:
        cap = getattr(pltpu.get_tpu_info(), "vmem_capacity_bytes", None)
    except Exception:
        cap = None
    if cap is None:
        try:
            kind = jax.devices()[0].device_kind.lower()
            cap = (128 << 20) if ("v5" in kind or "v6" in kind) else (64 << 20)
        except Exception:
            cap = 64 << 20  # conservative (v7x per-TensorCore VMEM)
    if cap >= (100 << 20):          # v5e / v6e: 128 MiB physical VMEM
        return 96 << 20, 72 << 20
    return 32 << 20, 24 << 20        # v7x-safe: 64 MiB per TensorCore


def _cap_for_two_grid_steps(tm, n):
    # >= 2 row-grid steps lets v7x shard the "parallel" axis across both TensorCores.
    if n >= 16:
        tm = min(tm, _round_up(pl.cdiv(n, 2), 8))
    return max(8, tm)


def _choose_row_tile(n, f_in, f_out_p, in_isz, out_isz, weight_bytes, budget):
    tm = _cap_for_two_grid_steps(min(2048, _round_up(n, 8)), n)

    def footprint(t):
        x_b = 2 * t * f_in * in_isz            # double-buffered x tile
        w_b = weight_bytes                     # single-buffered resident packed weight
        o_b = 2 * t * f_out_p * out_isz        # double-buffered output tile
        tmp = t * 2 * f_out_p * 4 + t * f_out_p * 4   # f32 matmul result + proba temps
        return x_b + w_b + o_b + tmp

    while tm > 8 and footprint(tm) > budget:
        tm = max(8, _round_up(tm // 2, 8))
    return tm


def _choose_k_tiles(n, f_in, two_f_out_p, in_isz, out_isz, budget, k_tile):
    f_out_p = two_f_out_p // 2
    tm = _cap_for_two_grid_steps(min(512, _round_up(n, 8)), n)
    if k_tile is not None:
        assert k_tile % 128 == 0, "k_tile must be a multiple of 128"
        tk = k_tile
    else:
        tk = min(_round_up(f_in, 128), 2048)

    def footprint(t, k):
        x_b = 2 * t * k * in_isz               # double-buffered x tile
        w_b = 2 * k * two_f_out_p * in_isz     # streamed (double-buffered) weight tile
        o_b = 2 * t * f_out_p * out_isz        # double-buffered output tile
        acc = t * two_f_out_p * 4              # f32 accumulator scratch
        return x_b + w_b + o_b + acc

    while tk > 128 and footprint(tm, tk) > budget:
        tk = max(128, _round_up(tk // 2, 128))
    while tm > 8 and footprint(tm, tk) > budget:
        tm = max(8, _round_up(tm // 2, 8))
    return tm, tk


# ---------------------------------------------------------------------------
# Forward wrapper
# ---------------------------------------------------------------------------

def born_forward(x, weight_packed, out_features, *, k_tile=None):
    """x: (N, F_in); weight_packed: (F_in, 2*F_out_p) from pack_born_weight.

    Returns (N, out_features) L1-normalized probabilities in x.dtype.
    """
    n, f_in = x.shape
    f_in_w, two_f_out_p = weight_packed.shape
    assert f_in == f_in_w
    assert two_f_out_p % 256 == 0, "pack_born_weight pads each half to a multiple of 128"
    f_out_p = two_f_out_p // 2
    assert out_features <= f_out_p

    # Matmul operands share the weight's dtype (e.g. bf16); accum/epilogue stay f32,
    # output is written back in the caller's x dtype.
    x_in = x if x.dtype == weight_packed.dtype else x.astype(weight_packed.dtype)
    out_dtype = x.dtype
    in_isz = jnp.dtype(x_in.dtype).itemsize
    out_isz = jnp.dtype(out_dtype).itemsize

    vmem_limit, tile_budget = _vmem_budgets()
    weight_bytes = f_in * two_f_out_p * in_isz

    cost = pl.CostEstimate(
        flops=2 * n * f_in * two_f_out_p,
        transcendentals=0,
        bytes_accessed=n * f_in * in_isz + weight_bytes + n * f_out_p * out_isz,
    )
    compiler_params = pltpu.CompilerParams(
        dimension_semantics=("parallel",),
        vmem_limit_bytes=vmem_limit,
    )

    # Fast path: packed weight stays VMEM-resident (leave >= half the budget for tiles).
    resident_ok = (k_tile is None) and (weight_bytes <= tile_budget // 2)

    if resident_ok:
        tm = _choose_row_tile(n, f_in, f_out_p, in_isz, out_isz, weight_bytes, tile_budget)

        def call_resident(single_buffer_weight):
            if single_buffer_weight:
                # Constant index_map => never re-fetched; second pipeline buffer is waste.
                w_spec = pl.BlockSpec((f_in, two_f_out_p), lambda i: (0, 0),
                                      pipeline_mode=pl.Buffered(1))
            else:
                w_spec = pl.BlockSpec((f_in, two_f_out_p), lambda i: (0, 0))
            return pl.pallas_call(
                functools.partial(born_kernel, f_out_p=f_out_p),
                out_shape=jax.ShapeDtypeStruct((n, f_out_p), out_dtype),
                grid_spec=pltpu.PrefetchScalarGridSpec(
                    num_scalar_prefetch=0,
                    grid=(pl.cdiv(n, tm),),
                    in_specs=[pl.BlockSpec((tm, f_in), lambda i: (i, 0)), w_spec],
                    out_specs=pl.BlockSpec((tm, f_out_p), lambda i: (i, 0)),
                ),
                compiler_params=compiler_params,
                cost_estimate=cost,
            )(x_in, weight_packed)

        try:
            out_padded = call_resident(True)
        except Exception:
            # Fallback if this jax/Mosaic version rejects pl.Buffered(1); the
            # <= budget/2 residency gate already leaves room for a second buffer.
            out_padded = call_resident(False)
    else:
        # K-tiled fallback: weight streamed in (tk, 2*F_out_p) slabs, f32 accumulator,
        # init at k==0, proba + L1-normalize epilogue at k==last.
        tm, tk = _choose_k_tiles(n, f_in, two_f_out_p, in_isz, out_isz, tile_budget, k_tile)
        f_in_p = _round_up(f_in, tk)
        w_in = weight_packed
        if f_in_p != f_in:
            # Zero-pad the contraction axis so tk divides it (zeros contribute nothing).
            # TODO(synk): hoist this pad to pack time if the K-tiled path is used hot.
            x_in = jnp.pad(x_in, ((0, 0), (0, f_in_p - f_in)))
            w_in = jnp.pad(w_in, ((0, f_in_p - f_in), (0, 0)))
        out_padded = pl.pallas_call(
            functools.partial(born_kernel_ktiled, f_out_p=f_out_p),
            out_shape=jax.ShapeDtypeStruct((n, f_out_p), out_dtype),
            grid_spec=pltpu.PrefetchScalarGridSpec(
                num_scalar_prefetch=0,
                grid=(pl.cdiv(n, tm), f_in_p // tk),
                in_specs=[
                    pl.BlockSpec((tm, tk), lambda i, k: (i, k)),
                    pl.BlockSpec((tk, two_f_out_p), lambda i, k: (k, 0)),
                ],
                out_specs=pl.BlockSpec((tm, f_out_p), lambda i, k: (i, 0)),
                scratch_shapes=[pltpu.VMEM((tm, two_f_out_p), jnp.float32)],
            ),
            compiler_params=pltpu.CompilerParams(
                dimension_semantics=("parallel", "arbitrary"),
                vmem_limit_bytes=vmem_limit,
            ),
            cost_estimate=cost,
        )(x_in, w_in)

    if out_features != f_out_p:
        out_padded = out_padded[:, :out_features]
    return out_padded


# ---------------------------------------------------------------------------
# Parameter init / packing (done once, outside the kernel)
# ---------------------------------------------------------------------------

def init_born_weight(key, in_features, out_features, dtype=jnp.float32):
    """Born init: (1/sqrt(S)) * e^{i theta}, theta ~ U(0, 2pi); returns (2, F_in, F_out)."""
    rho = 1.0 / math.sqrt(in_features)
    theta = 2.0 * math.pi * jax.random.uniform(key, (in_features, out_features))
    return jnp.stack((rho * jnp.cos(theta), rho * jnp.sin(theta))).astype(dtype)


def pack_born_weight(weight, dtype=None):
    """(2, F_in, F_out) -> (F_in, 2*F_out_p): real | imag along the output axis, each
    half zero-padded to a multiple of 128 lanes (lane-dense split/stores in-kernel).
    Packed once at init so the kernel runs a single fused MXU matmul; pass
    dtype=jnp.bfloat16 to store/stream the weight in the MXU-native dtype."""
    _, f_in, f_out = weight.shape
    f_out_p = _round_up(f_out, 128)
    if dtype is None:
        dtype = weight.dtype
    pad = ((0, 0), (0, f_out_p - f_out))
    real = jnp.pad(weight[0], pad)
    imag = jnp.pad(weight[1], pad)
    return jnp.concatenate((real, imag), axis=-1).astype(dtype)


if __name__ == "__main__":
    key = jax.random.PRNGKey(0)
    k_w1, k_x1, k_w3, k_x3 = jax.random.split(key, 4)

    # --- Case 1: strict float32, resident-weight fast path ---------------------
    n1, f_in1, f_out1 = 8, 32, 128
    w1 = init_born_weight(k_w1, f_in1, f_out1)                    # (2, 32, 128)
    w1_packed = jax.block_until_ready(pack_born_weight(w1))       # (32, 256), packed once
    x1 = jax.random.normal(k_x1, (n1, f_in1), jnp.float32)        # (8, 32)

    y1 = jax.block_until_ready(born_forward(x1, w1_packed, f_out1))
    real = x1 @ w1[0]
    imag = x1 @ w1[1]
    proba = real**2 + imag**2
    y1_ref = proba / jnp.maximum(jnp.sum(proba, axis=-1, keepdims=True), 1e-12)
    assert y1.shape == (n1, f_out1)
    assert jnp.allclose(y1, y1_ref, atol=1e-5, rtol=1e-5)
    assert jnp.allclose(jnp.sum(y1, axis=-1), 1.0, atol=1e-5)

    # --- Case 2: bf16 matmul operands, f32 accumulation/normalization, f32 out --
    w1_packed_bf16 = jax.block_until_ready(pack_born_weight(w1, dtype=jnp.bfloat16))
    y2 = jax.block_until_ready(born_forward(x1, w1_packed_bf16, f_out1))
    xb = x1.astype(jnp.bfloat16)
    real_b = jnp.dot(xb, w1[0].astype(jnp.bfloat16), preferred_element_type=jnp.float32)
    imag_b = jnp.dot(xb, w1[1].astype(jnp.bfloat16), preferred_element_type=jnp.float32)
    proba_b = real_b**2 + imag_b**2
    y2_ref = proba_b / jnp.maximum(jnp.sum(proba_b, axis=-1, keepdims=True), 1e-12)
    assert y2.dtype == jnp.float32
    assert jnp.allclose(y2, y2_ref, atol=1e-4, rtol=1e-3)
    assert jnp.allclose(jnp.sum(y2, axis=-1), 1.0, atol=1e-5)

    # --- Case 3: K-tiled fallback path + non-multiple-of-128 F_out padding ------
    n3, f_in3, f_out3 = 16, 256, 100
    w3 = init_born_weight(k_w3, f_in3, f_out3)                    # (2, 256, 100)
    w3_packed = jax.block_until_ready(pack_born_weight(w3))       # (256, 256) padded
    x3 = jax.random.normal(k_x3, (n3, f_in3), jnp.float32)        # (16, 256)
    y3 = jax.block_until_ready(born_forward(x3, w3_packed, f_out3, k_tile=128))
    real3 = x3 @ w3[0]
    imag3 = x3 @ w3[1]
    proba3 = real3**2 + imag3**2
    y3_ref = proba3 / jnp.maximum(jnp.sum(proba3, axis=-1, keepdims=True), 1e-12)
    assert y3.shape == (n3, f_out3)
    assert jnp.allclose(y3, y3_ref, atol=1e-4, rtol=1e-3)
    assert jnp.allclose(jnp.sum(y3, axis=-1), 1.0, atol=1e-5)

    print("KERNEL_OK")
</pallas_src>

<mosaic_0001>
module attributes {stable_mosaic.version = 11 : i64} {
  func.func @born_kernel(%arg0: i32, %arg1: memref<8x32xf32, #tpu.memory_space<vmem>>, %arg2: memref<32x256xf32, #tpu.memory_space<vmem>>, %arg3: memref<8x128xf32, #tpu.memory_space<vmem>>) attributes {dimension_semantics = [#tpu.dimension_semantics<parallel>], iteration_bounds = array<i64: 1>, scalar_prefetch = 0 : i64, scratch_operands = 0 : i64, tpu.core_type = #tpu.core_type<tc>, window_params = [{transform_indices = @transform_0, window_bounds = array<i64: 8, 32>}, {pipeline_mode = #tpu.pipeline_mode<synchronous>, transform_indices = @transform_1, window_bounds = array<i64: 32, 256>}, {transform_indices = @transform_2, window_bounds = array<i64: 8, 128>}]} {
    %c0 = arith.constant 0 : index
    %c0_0 = arith.constant 0 : index
    %0 = vector.load %arg1[%c0, %c0_0] : memref<8x32xf32, #tpu.memory_space<vmem>>, vector<8x32xf32>
    %c0_1 = arith.constant 0 : index
    %c0_2 = arith.constant 0 : index
    %1 = vector.load %arg2[%c0_1, %c0_2] : memref<32x256xf32, #tpu.memory_space<vmem>>, vector<32x256xf32>
    %cst = arith.constant dense<0.000000e+00> : vector<8x256xf32>
    %2 = tpu.matmul %0, %1, %cst {dimension_numbers = #tpu.dot_dimension_numbers<[1], [0], [0], [1], [0, 0, 1, 1], [], []>} : vector<8x32xf32>, vector<32x256xf32>, vector<8x256xf32> -> vector<8x256xf32>
    %3 = vector.extract_strided_slice %2 {offsets = [0, 0], sizes = [8, 128], strides = [1, 1]} : vector<8x256xf32> to vector<8x128xf32>
    %4 = vector.extract_strided_slice %2 {offsets = [0, 128], sizes = [8, 128], strides = [1, 1]} : vector<8x256xf32> to vector<8x128xf32>
    %5 = arith.mulf %3, %3 : vector<8x128xf32>
    %6 = arith.mulf %4, %4 : vector<8x128xf32>
    %7 = arith.addf %5, %6 : vector<8x128xf32>
    %cst_3 = arith.constant dense<0.000000e+00> : vector<8xf32>
    %8 = vector.multi_reduction <add>, %7, %cst_3 [1] : vector<8x128xf32> to vector<8xf32>
    %9 = vector.shape_cast %8 : vector<8xf32> to vector<8x1xf32>
    %cst_4 = arith.constant 9.99999996E-13 : f32
    %10 = vector.broadcast %cst_4 : f32 to vector<8x1xf32>
    %11 = arith.maximumf %9, %10 : vector<8x1xf32>
    %12 = tpu.reciprocal %11 : vector<8x1xf32> -> vector<8x1xf32>
    %13 = vector.broadcast %12 : vector<8x1xf32> to vector<8x128xf32>
    %14 = arith.mulf %7, %13 : vector<8x128xf32>
    %c0_5 = arith.constant 0 : index
    %c0_6 = arith.constant 0 : index
    %15 = vector.load %arg3[%c0_5, %c0_6] : memref<8x128xf32, #tpu.memory_space<vmem>>, vector<8x128xf32>
    tpu.vector_store %arg3[%c0_5, %c0_6], %14 {strides = array<i32>} : memref<8x128xf32, #tpu.memory_space<vmem>>, vector<8x128xf32>,
    return
  }
  func.func @transform_0(%arg0: i32) -> (i32, i32) {
    %c0_i32 = arith.constant 0 : i32
    %c0_i32_0 = arith.constant 0 : i32
    return %arg0, %c0_i32 : i32, i32
  }
  func.func @transform_1(%arg0: i32) -> (i32, i32) {
    %c0_i32 = arith.constant 0 : i32
    %c0_i32_0 = arith.constant 0 : i32
    %c0_i32_1 = arith.constant 0 : i32
    return %c0_i32, %c0_i32_0 : i32, i32
  }
  func.func @transform_2(%arg0: i32) -> (i32, i32) {
    %c0_i32 = arith.constant 0 : i32
    %c0_i32_0 = arith.constant 0 : i32
    return %arg0, %c0_i32 : i32, i32
  }
}

module attributes {stable_mosaic.version = 11 : i64} {
  func.func @born_kernel(%arg0: i32, %arg1: memref<8x32xf32, #tpu.memory_space<vmem>>, %arg2: memref<32x256xf32, #tpu.memory_space<vmem>>, %arg3: memref<8x128xf32, #tpu.memory_space<vmem>>) attributes {dimension_semantics = [#tpu.dimension_semantics<parallel>], iteration_bounds = array<i64: 1>, scalar_prefetch = 0 : i64, scratch_operands = 0 : i64, tpu.core_type = #tpu.core_type<tc>, window_params = [{transform_indices = @transform_0, window_bounds = array<i64: 8, 32>}, {pipeline_mode = #tpu.pipeline_mode<synchronous>, transform_indices = @transform_1, window_bounds = array<i64: 32, 256>}, {transform_indices = @transform_2, window_bounds = array<i64: 8, 128>}]} {
    %c0 = arith.constant 0 : index
    %c0_0 = arith.constant 0 : index
    %0 = vector.load %arg1[%c0, %c0_0] : memref<8x32xf32, #tpu.memory_space<vmem>>, vector<8x32xf32>
    %c0_1 = arith.constant 0 : index
    %c0_2 = arith.constant 0 : index
    %1 = vector.load %arg2[%c0_1, %c0_2] : memref<32x256xf32, #tpu.memory_space<vmem>>, vector<32x256xf32>
    %cst = arith.constant dense<0.000000e+00> : vector<8x256xf32>
    %2 = tpu.matmul %0, %1, %cst {dimension_numbers = #tpu.dot_dimension_numbers<[1], [0], [0], [1], [0, 0, 1, 1], [], []>} : vector<8x32xf32>, vector<32x256xf32>, vector<8x256xf32> -> vector<8x256xf32>
    %3 = vector.extract_strided_slice %2 {offsets = [0, 0], sizes = [8, 128], strides = [1, 1]} : vector<8x256xf32> to vector<8x128xf32>
    %4 = vector.extract_strided_slice %2 {offsets = [0, 128], sizes = [8, 128], strides = [1, 1]} : vector<8x256xf32> to vector<8x128xf32>
    %5 = arith.mulf %3, %3 : vector<8x128xf32>
    %6 = arith.mulf %4, %4 : vector<8x128xf32>
    %7 = arith.addf %5, %6 : vector<8x128xf32>
    %cst_3 = arith.constant dense<0.000000e+00> : vector<8xf32>
    %8 = vector.multi_reduction <add>, %7, %cst_3 [1] : vector<8x128xf32> to vector<8xf32>
    %9 = vector.shape_cast %8 : vector<8xf32> to vector<8x1xf32>
    %cst_4 = arith.constant 9.99999996E-13 : f32
    %10 = vector.broadcast %cst_4 : f32 to vector<8x1xf32>
    %11 = arith.maximumf %9, %10 : vector<8x1xf32>
    %12 = tpu.reciprocal %11 : vector<8x1xf32> -> vector<8x1xf32>
    %13 = vector.broadcast %12 : vector<8x1xf32> to vector<8x128xf32>
    %14 = arith.mulf %7, %13 : vector<8x128xf32>
    %c0_5 = arith.constant 0 : index
    %c0_6 = arith.constant 0 : index
    %15 = vector.load %arg3[%c0_5, %c0_6] : memref<8x128xf32, #tpu.memory_space<vmem>>, vector<8x128xf32>
    tpu.vector_store %arg3[%c0_5, %c0_6], %14 {strides = array<i32>} : memref<8x128xf32, #tpu.memory_space<vmem>>, vector<8x128xf32>,
    return
  }
  func.func @transform_0(%arg0: i32) -> (i32, i32) {
    %c0_i32 = arith.constant 0 : i32
    %c0_i32_0 = arith.constant 0 : i32
    return %arg0, %c0_i32 : i32, i32
  }
  func.func @transform_1(%arg0: i32) -> (i32, i32) {
    %c0_i32 = arith.constant 0 : i32
    %c0_i32_0 = arith.constant 0 : i32
    %c0_i32_1 = arith.constant 0 : i32
    return %c0_i32, %c0_i32_0 : i32, i32
  }
  func.func @transform_2(%arg0: i32) -> (i32, i32) {
    %c0_i32 = arith.constant 0 : i32
    %c0_i32_0 = arith.constant 0 : i32
    return %arg0, %c0_i32 : i32, i32
  }
}

</mosaic_0001>

<llo_original>
// kernel: tpu_custom_call.1
$region0: #{tpu_custom_call.1}
  #allocation0 [shape = 'u32[]', space=smem, size = 0x4, offset = 0x4, fixed_abs, tag = 'smem constant byte address 0x4 - core index']
  #allocation1 [shape = 'u32[144,128]{1,0:T(1,128)}', space=vmem, size = 0x12000, scoped, tag = 'internal scratch']
  %s0 = inlined_call_operand.hbm [shape: f32[8,32], index: 0, kind: input, shape index: {}]
  %s1 = inlined_call_operand.hbm [shape: f32[32,256], index: 1, kind: input, shape index: {}]
  %s2 = inlined_call_operand.hbm [shape: f32[8,128], index: 2, kind: output, shape index: {}]
  %s3 = sld [smem:[#allocation0]]
  $region26: #{tpu_custom_call.1} parent=0
    _
  %s5 = ssub.s32 1, %s3
  %s6 = scalar_select 0, %s5, %s3
  $region1: #{tpu_custom_call.1} parent=0
    #allocation2 [shape = 'u8[4096]{0}', space=vmem, size = 0x1000, scoped, tag = 'input window, operand 0, single buffered']
    #allocation3 [shape = 's32[1]{0}', space=sflag, size = 0x4, scoped, tag = 'scoped memory for tpu_custom_call.1']
    #allocation4 [shape = 's32[1]{0}', space=sflag, size = 0x4, scoped, tag = 'scoped memory for tpu_custom_call.1']
    #allocation5 [shape = 'u8[32768]{0}', space=vmem, size = 0x8000, scoped, tag = 'input window, operand 1, single buffered']
    #allocation6 [shape = 's32[1]{0}', space=sflag, size = 0x4, scoped, tag = 'scoped memory for tpu_custom_call.1']
    #allocation7 [shape = 'u8[4096]{0}', space=vmem, size = 0x1000, scoped, tag = 'output window, operand 0, single buffered']
    %7 = vsyncpa [#allocation3], 0
    %8 = vsyncpa [#allocation6], 0
    %9 = vsyncpa [#allocation4], 0
    // Predicated region
    $region2: #{tpu_custom_call.1} parent=1 // pred_check
      _
    $region3: #{tpu_custom_call.1} parent=1 // pred_check_branch
      %11 = sbr.rel (0) target = $region5
    $region4: #{tpu_custom_call.1} parent=1 // pred_region
      %s13 = ssub.s32 128, 128
      %14 = vsyncadd [#allocation3], %s13
      %s16 = sshll.u32 [#allocation2], 4
      %s17 = int_to_ptr.vmem [resolvable:$true] %s16
      %19 = dma.hbm_to_vmem [thread:$0]  %s0, 128, %s17, [#allocation3]
    $region5: #{tpu_custom_call.1} parent=1 // pred_fallthru
      _
    // Predicated region
    $region6: #{tpu_custom_call.1} parent=1 // pred_check
      _
    $region7: #{tpu_custom_call.1} parent=1 // pred_check_branch
      %21 = sbr.rel (0) target = $region9
    $region8: #{tpu_custom_call.1} parent=1 // pred_region
      %s23 = ssub.s32 1024, 1024
      %24 = vsyncadd [#allocation6], %s23
      %s25 = sshll.u32 [#allocation5], 4
      %s26 = int_to_ptr.vmem [resolvable:$true] %s25
      %31 = dma.hbm_to_vmem [thread:$0]  %s1, 1024, %s26, [#allocation6], 256, 256, 16
    $region9: #{tpu_custom_call.1} parent=1 // pred_fallthru
      _
    // Predicated region
    $region10: #{tpu_custom_call.1} parent=1 // pred_check
      _
    $region11: #{tpu_custom_call.1} parent=1 // pred_check_branch
      %33 = sbr.rel (0) target = $region13
    $region12: #{tpu_custom_call.1} parent=1 // pred_region
      %34 = dma.done [#allocation3], 128
    $region13: #{tpu_custom_call.1} parent=1 // pred_fallthru
      _
    // Predicated region
    $region14: #{tpu_custom_call.1} parent=1 // pred_check
      _
    $region15: #{tpu_custom_call.1} parent=1 // pred_check_branch
      %36 = sbr.rel (0) target = $region17
    $region16: #{tpu_custom_call.1} parent=1 // pred_region
      %37 = dma.done [#allocation6], 1024
    $region17: #{tpu_custom_call.1} parent=1 // pred_fallthru
      _
    %v38 = vld [vmem:[#allocation2] sm:$0xff]
    %v39 = vld [vmem:[#allocation5] sm:$0xff]
    %v40 = vld [vmem:[#allocation5 + $0x8] sm:$0xff]
    %v41 = vld [vmem:[#allocation5 + $0x10] sm:$0xff]
    %v42 = vld [vmem:[#allocation5 + $0x18] sm:$0xff]
    %v43 = vld [vmem:[#allocation5 + $0x20] sm:$0xff]
    %v44 = vld [vmem:[#allocation5 + $0x28] sm:$0xff]
    %v45 = vld [vmem:[#allocation5 + $0x30] sm:$0xff]
    %v46 = vld [vmem:[#allocation5 + $0x38] sm:$0xff]
    %vm47 = vcmask 261120
    %v49 = vsel %vm47, %v38, 0
    %51 = vmatprep.subr.mxu0 0.0
    %52 = vmatpush1.msra.mxu0 0.0
    %53 = vmatprep.subr.mxu0 0.0
    %54 = vmatpush1.msra.mxu0 0.0
    %55 = vmatprep.subr.mxu0 0.0
    %56 = vmatpush1.msra.mxu0 0.0
    %57 = vmatprep.subr.mxu0 0.0
    %58 = vmatpush1.msra.mxu0 0.0
    %59 = vmatprep.subr.mxu0 0.0
    %60 = vmatpush1.msra.mxu0 0.0
    %61 = vmatprep.subr.mxu0 0.0
    %62 = vmatpush1.msra.mxu0 0.0
    %63 = vmatprep.subr.mxu0 0.0
    %64 = vmatpush1.msra.mxu0 0.0
    %65 = vmatprep.subr.mxu0 0.0
    %66 = vmatpush1.msra.mxu0 0.0
    %67 = vmatprep.subr.mxu0 0.0
    %68 = vmatpush1.msra.mxu0 0.0
    %69 = vmatprep.subr.mxu0 0.0
    %70 = vmatpush1.msra.mxu0 0.0
    %71 = vmatprep.subr.mxu0 0.0
    %72 = vmatpush1.msra.mxu0 0.0
    %73 = vmatprep.subr.mxu0 0.0
    %74 = vmatpush1.msra.mxu0 0.0
    %75 = vmatprep.subr.mxu0 %v46
    %76 = vmatpush1.msra.mxu0 %v45
    %77 = vmatprep.subr.mxu0 %v44
    %78 = vmatpush1.msra.mxu0 %v43
    %79 = vmatprep.subr.mxu0 %v42
    %80 = vmatpush1.msra.mxu0 %v41
    %81 = vmatprep.subr.mxu0 %v40
    %82 = vmatpush1.msra.mxu0 %v39
    %83 = vmatprep.subr.mxu0 0.0
    %84 = vmatpush2.msra.mxu0 0.0
    %85 = vmatprep.subr.mxu0 0.0
    %86 = vmatpush2.msra.mxu0 0.0
    %87 = vmatprep.subr.mxu0 0.0
    %88 = vmatpush2.msra.mxu0 0.0
    %89 = vmatprep.subr.mxu0 0.0
    %90 = vmatpush2.msra.mxu0 0.0
    %91 = vmatprep.subr.mxu0 0.0
    %92 = vmatpush2.msra.mxu0 0.0
    %93 = vmatprep.subr.mxu0 0.0
    %94 = vmatpush2.msra.mxu0 0.0
    %95 = vmatprep.subr.mxu0 0.0
    %96 = vmatpush2.msra.mxu0 0.0
    %97 = vmatprep.subr.mxu0 0.0
    %98 = vmatpush2.msra.mxu0 0.0
    %99 = vmatprep.subr.mxu0 0.0
    %100 = vmatpush2.msra.mxu0 0.0
    %101 = vmatprep.subr.mxu0 0.0
    %102 = vmatpush2.msra.mxu0 0.0
    %103 = vmatprep.subr.mxu0 0.0
    %104 = vmatpush2.msra.mxu0 0.0
    %105 = vmatprep.subr.mxu0 0.0
    %106 = vmatpush2.msra.mxu0 0.0
    %107 = vmatprep.subr.mxu0 0.0
    %108 = vmatpush2.msra.mxu0 0.0
    %109 = vmatprep.subr.mxu0 0.0
    %110 = vmatpush2.msra.mxu0 0.0
    %111 = vmatprep.subr.mxu0 0.0
    %112 = vmatpush2.msra.mxu0 0.0
    %113 = vmatprep.subr.mxu0 0.0
    %114 = vmatpush2.msra.mxu0 0.0
    %115 = vmatprep.mubr.f32.mxu0 0.0
    %116 = vmatmul.mubr.f32.gmra.mxu0 %v49
    %v117 = vpop.f32.mrf.mxu0
    %v118 = vadd.f32 0.0, %v117
    %v119 = vpop.f32.mrf.mxu0
    %v120 = vadd.f32 0.0, %v119
    %121 = vdwg.mxu0
    %v122 = vmul.f32 %v118, %v118
    %v123 = vmul.f32 %v120, %v120
    %v124 = vadd.f32 %v122, %v123
    %125 = vadd.xlane.f32.xlu0 %v124
    %v126 = vpop.xlane.xlu0 %125
    %v127 = vmax.f32 %v126, 1e-12
    %v128 = vrcp.pop %v127
    %v129 = vmul.f32 %v124, %v128
    %130 = vst [vmem:[#allocation7] sm:$0xff] %v129
    // Predicated region
    $region18: #{tpu_custom_call.1} parent=1 // pred_check
      _
    $region19: #{tpu_custom_call.1} parent=1 // pred_check_branch
      %132 = sbr.rel (0) target = $region21
    $region20: #{tpu_custom_call.1} parent=1 // pred_region
      %s134 = ssub.s32 128, 128
      %135 = vsyncadd [#allocation4], %s134
      %s137 = sshll.u32 [#allocation7], 4
      %s138 = int_to_ptr.vmem [resolvable:$true] %s137
      %140 = dma.vmem_to_hbm [thread:$0]  %s138, 128, %s2, [#allocation4]
    $region21: #{tpu_custom_call.1} parent=1 // pred_fallthru
      _
    // Predicated region
    $region22: #{tpu_custom_call.1} parent=1 // pred_check
      _
    $region23: #{tpu_custom_call.1} parent=1 // pred_check_branch
      %142 = sbr.rel (0) target = $region25
    $region24: #{tpu_custom_call.1} parent=1 // pred_region
      %143 = dma.done [#allocation4], 128
    $region25: #{tpu_custom_call.1} parent=1 // pred_fallthru
      _
    %144 = vsyncpa [#allocation3], 1
    %145 = vsyncpa [#allocation6], 1
    %146 = vsyncpa [#allocation4], 1

// kernel: tpu_custom_call.1
$region0: #{tpu_custom_call.1}
  #allocation0 [shape = 'u32[]', space=smem, size = 0x4, offset = 0x4, fixed_abs, tag = 'smem constant byte address 0x4 - core index']
  #allocation1 [shape = 'u32[144,128]{1,0:T(1,128)}', space=vmem, size = 0x12000, scoped, tag = 'internal scratch']
  %s0 = inlined_call_operand.hbm [shape: f32[8,32], index: 0, kind: input, shape index: {}]
  %s1 = inlined_call_operand.hbm [shape: f32[32,256], index: 1, kind: input, shape index: {}]
  %s2 = inlined_call_operand.hbm [shape: f32[8,128], index: 2, kind: output, shape index: {}]
  %s3 = sld [smem:[#allocation0]]
  $region26: #{tpu_custom_call.1} parent=0
    _
  %s5 = ssub.s32 1, %s3
  %s6 = scalar_select 0, %s5, %s3
  $region1: #{tpu_custom_call.1} parent=0
    #allocation2 [shape = 'u8[4096]{0}', space=vmem, size = 0x1000, scoped, tag = 'input window, operand 0, single buffered']
    #allocation3 [shape = 's32[1]{0}', space=sflag, size = 0x4, scoped, tag = 'scoped memory for tpu_custom_call.1']
    #allocation4 [shape = 's32[1]{0}', space=sflag, size = 0x4, scoped, tag = 'scoped memory for tpu_custom_call.1']
    #allocation5 [shape = 'u8[32768]{0}', space=vmem, size = 0x8000, scoped, tag = 'input window, operand 1, single buffered']
    #allocation6 [shape = 's32[1]{0}', space=sflag, size = 0x4, scoped, tag = 'scoped memory for tpu_custom_call.1']
    #allocation7 [shape = 'u8[4096]{0}', space=vmem, size = 0x1000, scoped, tag = 'output window, operand 0, single buffered']
    %7 = vsyncpa [#allocation3], 0
    %8 = vsyncpa [#allocation6], 0
    %9 = vsyncpa [#allocation4], 0
    // Predicated region
    $region2: #{tpu_custom_call.1} parent=1 // pred_check
      _
    $region3: #{tpu_custom_call.1} parent=1 // pred_check_branch
      %11 = sbr.rel (0) target = $region5
    $region4: #{tpu_custom_call.1} parent=1 // pred_region
      %s13 = ssub.s32 128, 128
      %14 = vsyncadd [#allocation3], %s13
      %s16 = sshll.u32 [#allocation2], 4
      %s17 = int_to_ptr.vmem [resolvable:$true] %s16
      %19 = dma.hbm_to_vmem [thread:$0]  %s0, 128, %s17, [#allocation3]
    $region5: #{tpu_custom_call.1} parent=1 // pred_fallthru
      _
    // Predicated region
    $region6: #{tpu_custom_call.1} parent=1 // pred_check
      _
    $region7: #{tpu_custom_call.1} parent=1 // pred_check_branch
      %21 = sbr.rel (0) target = $region9
    $region8: #{tpu_custom_call.1} parent=1 // pred_region
      %s23 = ssub.s32 1024, 1024
      %24 = vsyncadd [#allocation6], %s23
      %s25 = sshll.u32 [#allocation5], 4
      %s26 = int_to_ptr.vmem [resolvable:$true] %s25
      %31 = dma.hbm_to_vmem [thread:$0]  %s1, 1024, %s26, [#allocation6], 256, 256, 16
    $region9: #{tpu_custom_call.1} parent=1 // pred_fallthru
      _
    // Predicated region
    $region10: #{tpu_custom_call.1} parent=1 // pred_check
      _
    $region11: #{tpu_custom_call.1} parent=1 // pred_check_branch
      %33 = sbr.rel (0) target = $region13
    $region12: #{tpu_custom_call.1} parent=1 // pred_region
      %34 = dma.done [#allocation3], 128
    $region13: #{tpu_custom_call.1} parent=1 // pred_fallthru
      _
    // Predicated region
    $region14: #{tpu_custom_call.1} parent=1 // pred_check
      _
    $region15: #{tpu_custom_call.1} parent=1 // pred_check_branch
      %36 = sbr.rel (0) target = $region17
    $region16: #{tpu_custom_call.1} parent=1 // pred_region
      %37 = dma.done [#allocation6], 1024
    $region17: #{tpu_custom_call.1} parent=1 // pred_fallthru
      _
    %v38 = vld [vmem:[#allocation2] sm:$0xff]
    %v39 = vld [vmem:[#allocation5] sm:$0xff]
    %v40 = vld [vmem:[#allocation5 + $0x8] sm:$0xff]
    %v41 = vld [vmem:[#allocation5 + $0x10] sm:$0xff]
    %v42 = vld [vmem:[#allocation5 + $0x18] sm:$0xff]
    %v43 = vld [vmem:[#allocation5 + $0x20] sm:$0xff]
    %v44 = vld [vmem:[#allocation5 + $0x28] sm:$0xff]
    %v45 = vld [vmem:[#allocation5 + $0x30] sm:$0xff]
    %v46 = vld [vmem:[#allocation5 + $0x38] sm:$0xff]
    %vm47 = vcmask 261120
    %v49 = vsel %vm47, %v38, 0
    %51 = vmatprep.subr.mxu0 0.0
    %52 = vmatpush1.msra.mxu0 0.0
    %53 = vmatprep.subr.mxu0 0.0
    %54 = vmatpush1.msra.mxu0 0.0
    %55 = vmatprep.subr.mxu0 0.0
    %56 = vmatpush1.msra.mxu0 0.0
    %57 = vmatprep.subr.mxu0 0.0
    %58 = vmatpush1.msra.mxu0 0.0
    %59 = vmatprep.subr.mxu0 0.0
    %60 = vmatpush1.msra.mxu0 0.0
    %61 = vmatprep.subr.mxu0 0.0
    %62 = vmatpush1.msra.mxu0 0.0
    %63 = vmatprep.subr.mxu0 0.0
    %64 = vmatpush1.msra.mxu0 0.0
    %65 = vmatprep.subr.mxu0 0.0
    %66 = vmatpush1.msra.mxu0 0.0
    %67 = vmatprep.subr.mxu0 0.0
    %68 = vmatpush1.msra.mxu0 0.0
    %69 = vmatprep.subr.mxu0 0.0
    %70 = vmatpush1.msra.mxu0 0.0
    %71 = vmatprep.subr.mxu0 0.0
    %72 = vmatpush1.msra.mxu0 0.0
    %73 = vmatprep.subr.mxu0 0.0
    %74 = vmatpush1.msra.mxu0 0.0
    %75 = vmatprep.subr.mxu0 %v46
    %76 = vmatpush1.msra.mxu0 %v45
    %77 = vmatprep.subr.mxu0 %v44
    %78 = vmatpush1.msra.mxu0 %v43
    %79 = vmatprep.subr.mxu0 %v42
    %80 = vmatpush1.msra.mxu0 %v41
    %81 = vmatprep.subr.mxu0 %v40
    %82 = vmatpush1.msra.mxu0 %v39
    %83 = vmatprep.subr.mxu0 0.0
    %84 = vmatpush2.msra.mxu0 0.0
    %85 = vmatprep.subr.mxu0 0.0
    %86 = vmatpush2.msra.mxu0 0.0
    %87 = vmatprep.subr.mxu0 0.0
    %88 = vmatpush2.msra.mxu0 0.0
    %89 = vmatprep.subr.mxu0 0.0
    %90 = vmatpush2.msra.mxu0 0.0
    %91 = vmatprep.subr.mxu0 0.0
    %92 = vmatpush2.msra.mxu0 0.0
    %93 = vmatprep.subr.mxu0 0.0
    %94 = vmatpush2.msra.mxu0 0.0
    %95 = vmatprep.subr.mxu0 0.0
    %96 = vmatpush2.msra.mxu0 0.0
    %97 = vmatprep.subr.mxu0 0.0
    %98 = vmatpush2.msra.mxu0 0.0
    %99 = vmatprep.subr.mxu0 0.0
    %100 = vmatpush2.msra.mxu0 0.0
    %101 = vmatprep.subr.mxu0 0.0
    %102 = vmatpush2.msra.mxu0 0.0
    %103 = vmatprep.subr.mxu0 0.0
    %104 = vmatpush2.msra.mxu0 0.0
    %105 = vmatprep.subr.mxu0 0.0
    %106 = vmatpush2.msra.mxu0 0.0
    %107 = vmatprep.subr.mxu0 0.0
    %108 = vmatpush2.msra.mxu0 0.0
    %109 = vmatprep.subr.mxu0 0.0
    %110 = vmatpush2.msra.mxu0 0.0
    %111 = vmatprep.subr.mxu0 0.0
    %112 = vmatpush2.msra.mxu0 0.0
    %113 = vmatprep.subr.mxu0 0.0
    %114 = vmatpush2.msra.mxu0 0.0
    %115 = vmatprep.mubr.f32.mxu0 0.0
    %116 = vmatmul.mubr.f32.gmra.mxu0 %v49
    %v117 = vpop.f32.mrf.mxu0
    %v118 = vadd.f32 0.0, %v117
    %v119 = vpop.f32.mrf.mxu0
    %v120 = vadd.f32 0.0, %v119
    %121 = vdwg.mxu0
    %v122 = vmul.f32 %v118, %v118
    %v123 = vmul.f32 %v120, %v120
    %v124 = vadd.f32 %v122, %v123
    %125 = vadd.xlane.f32.xlu0 %v124
    %v126 = vpop.xlane.xlu0 %125
    %v127 = vmax.f32 %v126, 1e-12
    %v128 = vrcp.pop %v127
    %v129 = vmul.f32 %v124, %v128
    %130 = vst [vmem:[#allocation7] sm:$0xff] %v129
    // Predicated region
    $region18: #{tpu_custom_call.1} parent=1 // pred_check
      _
    $region19: #{tpu_custom_call.1} parent=1 // pred_check_branch
      %132 = sbr.rel (0) target = $region21
    $region20: #{tpu_custom_call.1} parent=1 // pred_region
      %s134 = ssub.s32 128, 128
      %135 = vsyncadd [#allocation4], %s134
      %s137 = sshll.u32 [#allocation7], 4
      %s138 = int_to_ptr.vmem [resolvable:$true] %s137
      %140 = dma.vmem_to_hbm [thread:$0]  %s138, 128, %s2, [#allocation4]
    $region21: #{tpu_custom_call.1} parent=1 // pred_fallthru
      _
    // Predicated region
    $region22: #{tpu_custom_call.1} parent=1 // pred_check
      _
    $region23: #{tpu_custom_call.1} parent=1 // pred_check_branch
      %142 = sbr.rel (0) target = $region25
    $region24: #{tpu_custom_call.1} parent=1 // pred_region
      %143 = dma.done [#allocation4], 128
    $region25: #{tpu_custom_call.1} parent=1 // pred_fallthru
      _
    %144 = vsyncpa [#allocation3], 1
    %145 = vsyncpa [#allocation6], 1
    %146 = vsyncpa [#allocation4], 1

</llo_original>
